<compile_context>
chip_gen: v6e
topology: v6e:2x2x1
jax: 0.10.0
libtpu: 0.0.40
codegen_flags: <defaults>
</compile_context>

<pallas_src>
import jax
import jax.numpy as jnp
from jax.experimental import pallas as pl
from jax.experimental.pallas import tpu as pltpu


def _round_up(v, m):
    return (v + m - 1) // m * m


def rbfn_kernel(neg_beta_ref, x_ref, c2b_ref, csqnb_ref, w_ref, b_ref, out_ref):
    # neg_beta_ref : SMEM (1, 1)        -beta  (f32)
    # x_ref        : VMEM (TILE_N, D)   input tile (native dtype)
    # c2b_ref      : VMEM (D, KP)       (2*beta) * centers^T, zero-padded cols
    # csqnb_ref    : VMEM (1, KP)       -beta * ||c||^2       (zeros in pad)
    # w_ref        : VMEM (KP, OUT)     Linear weight^T (bf16), pad rows zero
    # b_ref        : VMEM (1, OUT)      Linear bias (f32)
    # out_ref      : VMEM (TILE_N, OUT)
    xf = x_ref[...].astype(jnp.float32)
    neg_beta = neg_beta_ref[0, 0]

    # Distance matmul stays f32: the ||x||^2 + ||c||^2 - 2 x.c decomposition is
    # cancellation-sensitive, bf16 here would degrade d2 accuracy.
    xc = jnp.dot(xf, c2b_ref[...], preferred_element_type=jnp.float32)   # (TILE_N, KP)
    x_sq = jnp.sum(xf * xf, axis=-1, keepdims=True)                      # (TILE_N, 1)

    # -beta*d2 = 2*beta*x.c - beta*||x||^2 - beta*||c||^2, clamped <= 0.
    arg = jnp.minimum(xc + neg_beta * x_sq + csqnb_ref[...], 0.0)
    phi = jnp.exp(arg)                                                   # EUP, in [0,1]

    # nn.Linear: phi @ W.T + b. bf16 operands, f32 accumulation on the MXU.
    out = jnp.dot(phi.astype(w_ref.dtype), w_ref[...],
                  preferred_element_type=jnp.float32) + b_ref[...]
    out_ref[...] = out.astype(out_ref.dtype)


def rbfn_forward(x, centers, beta, w, b, *, linear_dtype=jnp.bfloat16):
    N, D = x.shape
    K, _ = centers.shape
    OUT = w.shape[0]

    LANE = 128
    KP = _round_up(max(K, LANE), LANE)   # lane-dense RBF dim (phi tile)

    # Batch tile: big enough to amortize per-step overhead, multiple of 8.
    TILE_N = min(1024, _round_up(N, 8))
    # Give megacore (v7x: 2 TCs) at least 2 grid steps when N is non-trivial.
    if N >= 256 and pl.cdiv(N, TILE_N) < 2:
        TILE_N = _round_up(pl.cdiv(N, 2), 8)
    grid = (pl.cdiv(N, TILE_N),)

    f32 = jnp.float32
    beta_f = jnp.asarray(beta, f32).reshape(())

    # --- host-side layout plumbing (constants folded into operands) --------
    c_p = jnp.zeros((KP, D), f32).at[:K, :].set(centers.astype(f32))
    c2b = (2.0 * beta_f) * c_p.T                                          # (D, KP)
    csq_nb = (-beta_f) * jnp.sum(c_p * c_p, axis=-1, keepdims=True).T     # (1, KP)
    # Padded W rows are zero -> padded phi columns contribute nothing.
    w_p = jnp.zeros((KP, OUT), f32).at[:K, :].set(w.astype(f32).T).astype(linear_dtype)
    b_p = b.astype(f32).reshape(1, OUT)
    neg_beta = (-beta_f).reshape(1, 1)

    x_isz = jnp.dtype(x.dtype).itemsize
    w_isz = jnp.dtype(linear_dtype).itemsize

    # VMEM budget: double-buffered x/out tiles + residents + phi/xc temps.
    vmem_bytes = (2 * (TILE_N * D * x_isz + TILE_N * OUT * 4)
                  + (D * KP + KP + OUT) * 4 + KP * OUT * w_isz
                  + 2 * TILE_N * KP * 4)
    vmem_limit = int(min(max(2 * vmem_bytes, 32 << 20), 64 << 20))

    cost = pl.CostEstimate(
        flops=2 * N * KP * D + 2 * N * KP * OUT + 4 * N * KP,
        transcendentals=N * KP,
        bytes_accessed=(N * D * x_isz + N * OUT * 4
                        + (D * KP + KP + OUT) * 4 + KP * OUT * w_isz),
    )

    return pl.pallas_call(
        rbfn_kernel,
        out_shape=jax.ShapeDtypeStruct((N, OUT), f32),
        grid=grid,
        in_specs=[
            pl.BlockSpec(memory_space=pltpu.MemorySpace.SMEM),       # -beta scalar
            pl.BlockSpec((TILE_N, D), lambda i: (i, 0)),             # x tile
            pl.BlockSpec((D, KP), lambda i: (0, 0)),                 # 2b*c^T (resident)
            pl.BlockSpec((1, KP), lambda i: (0, 0)),                 # -b*||c||^2 (resident)
            pl.BlockSpec((KP, OUT), lambda i: (0, 0)),               # W^T (resident)
            pl.BlockSpec((1, OUT), lambda i: (0, 0)),                # bias (resident)
        ],
        out_specs=pl.BlockSpec((TILE_N, OUT), lambda i: (i, 0)),
        compiler_params=pltpu.CompilerParams(
            dimension_semantics=("parallel",),
            vmem_limit_bytes=vmem_limit),
        cost_estimate=cost,
    )(neg_beta, x, c2b, csq_nb, w_p, b_p)


def rbfn_reference(x, centers, beta, w, b):
    d2 = jnp.sum((x[:, None, :] - centers[None, :, :]) ** 2, axis=-1)
    phi = jnp.exp(-beta * d2)
    return phi @ w.T + b


if __name__ == "__main__":
    num_centers = 10
    input_dim = 32
    output_dim = 4
    batch = 8

    key = jax.random.PRNGKey(0)
    k_x, k_c, k_w, k_b = jax.random.split(key, 4)

    # Deterministic synthetic parameters (shapes match the PyTorch __init__).
    # Scaled down so pairwise distances are O(1) and phi is non-trivial.
    x = 0.1 * jax.random.normal(k_x, (batch, input_dim), dtype=jnp.float32)
    centers = 0.1 * jax.random.normal(k_c, (num_centers, input_dim), dtype=jnp.float32)
    beta = jnp.full((1,), 2.0, dtype=jnp.float32)        # nn.Parameter(torch.ones(1)*2)
    # nn.Linear(num_centers, output_dim): weight (out, in), bias (out,)
    bound = 1.0 / jnp.sqrt(num_centers)
    w = jax.random.uniform(k_w, (output_dim, num_centers),
                           minval=-bound, maxval=bound, dtype=jnp.float32)
    b = jax.random.uniform(k_b, (output_dim,),
                           minval=-bound, maxval=bound, dtype=jnp.float32)

    ref = rbfn_reference(x, centers, beta[0], w, b)

    # Full-batch run (exact tiles). bf16 Linear weights -> modest tolerance.
    out = jax.block_until_ready(rbfn_forward(x, centers, beta, w, b))
    assert out.shape == (batch, output_dim)
    assert jnp.allclose(out, ref, atol=1e-2, rtol=1e-2), "mismatch vs reference"

    # Non-multiple-of-tile batch: exercises the masked partial output block.
    n_odd = 5
    out_odd = jax.block_until_ready(rbfn_forward(x[:n_odd], centers, beta, w, b))
    assert out_odd.shape == (n_odd, output_dim)
    assert jnp.allclose(out_odd, ref[:n_odd], atol=1e-2, rtol=1e-2), \
        "mismatch vs reference on partial tile"

    print("KERNEL_OK")
</pallas_src>

<mosaic_0001>
module attributes {stable_mosaic.version = 11 : i64} {
  func.func @rbfn_kernel(%arg0: i32, %arg1: memref<1x1xf32, #tpu.memory_space<smem>>, %arg2: memref<8x32xf32, #tpu.memory_space<vmem>>, %arg3: memref<32x128xf32, #tpu.memory_space<vmem>>, %arg4: memref<1x128xf32, #tpu.memory_space<vmem>>, %arg5: memref<128x4xbf16, #tpu.memory_space<vmem>>, %arg6: memref<1x4xf32, #tpu.memory_space<vmem>>, %arg7: memref<8x4xf32, #tpu.memory_space<vmem>>) attributes {dimension_semantics = [#tpu.dimension_semantics<parallel>], iteration_bounds = array<i64: 1>, scalar_prefetch = 0 : i64, scratch_operands = 0 : i64, tpu.core_type = #tpu.core_type<tc>, window_params = [{transform_indices = @transform_0, window_bounds = array<i64: 1, 1>}, {transform_indices = @transform_1, window_bounds = array<i64: 8, 32>}, {pipeline_mode = #tpu.pipeline_mode<synchronous>, transform_indices = @transform_2, window_bounds = array<i64: 32, 128>}, {pipeline_mode = #tpu.pipeline_mode<synchronous>, transform_indices = @transform_3, window_bounds = array<i64: 1, 128>}, {pipeline_mode = #tpu.pipeline_mode<synchronous>, transform_indices = @transform_4, window_bounds = array<i64: 128, 4>}, {pipeline_mode = #tpu.pipeline_mode<synchronous>, transform_indices = @transform_5, window_bounds = array<i64: 1, 4>}, {transform_indices = @transform_6, window_bounds = array<i64: 8, 4>}]} {
    %c0 = arith.constant 0 : index
    %c0_0 = arith.constant 0 : index
    %0 = vector.load %arg2[%c0, %c0_0] : memref<8x32xf32, #tpu.memory_space<vmem>>, vector<8x32xf32>
    %c0_1 = arith.constant 0 : index
    %c0_2 = arith.constant 0 : index
    %1 = memref.load %arg1[%c0_1, %c0_2] : memref<1x1xf32, #tpu.memory_space<smem>>
    %c0_3 = arith.constant 0 : index
    %c0_4 = arith.constant 0 : index
    %2 = vector.load %arg3[%c0_3, %c0_4] : memref<32x128xf32, #tpu.memory_space<vmem>>, vector<32x128xf32>
    %cst = arith.constant dense<0.000000e+00> : vector<8x128xf32>
    %3 = tpu.matmul %0, %2, %cst {dimension_numbers = #tpu.dot_dimension_numbers<[1], [0], [0], [1], [0, 0, 1, 1], [], []>} : vector<8x32xf32>, vector<32x128xf32>, vector<8x128xf32> -> vector<8x128xf32>
    %4 = arith.mulf %0, %0 : vector<8x32xf32>
    %cst_5 = arith.constant dense<0.000000e+00> : vector<8xf32>
    %5 = vector.multi_reduction <add>, %4, %cst_5 [1] : vector<8x32xf32> to vector<8xf32>
    %6 = vector.shape_cast %5 : vector<8xf32> to vector<8x1xf32>
    %7 = vector.broadcast %1 : f32 to vector<8x1xf32>
    %8 = arith.mulf %7, %6 : vector<8x1xf32>
    %9 = vector.broadcast %8 : vector<8x1xf32> to vector<8x128xf32>
    %10 = arith.addf %3, %9 : vector<8x128xf32>
    %c0_6 = arith.constant 0 : index
    %c0_7 = arith.constant 0 : index
    %11 = vector.load %arg4[%c0_6, %c0_7] : memref<1x128xf32, #tpu.memory_space<vmem>>, vector<1x128xf32>
    %12 = vector.broadcast %11 : vector<1x128xf32> to vector<8x128xf32>
    %13 = arith.addf %10, %12 : vector<8x128xf32>
    %cst_8 = arith.constant 0.000000e+00 : f32
    %14 = vector.broadcast %cst_8 : f32 to vector<8x128xf32>
    %15 = arith.minimumf %13, %14 : vector<8x128xf32>
    %16 = math.exp %15 : vector<8x128xf32>
    %17 = arith.truncf %16 : vector<8x128xf32> to vector<8x128xbf16>
    %c0_9 = arith.constant 0 : index
    %c0_10 = arith.constant 0 : index
    %18 = vector.load %arg5[%c0_9, %c0_10] : memref<128x4xbf16, #tpu.memory_space<vmem>>, vector<128x4xbf16>
    %cst_11 = arith.constant dense<0.000000e+00> : vector<8x4xf32>
    %19 = tpu.matmul %17, %18, %cst_11 {dimension_numbers = #tpu.dot_dimension_numbers<[1], [0], [0], [1], [0, 0, 1, 1], [], []>} : vector<8x128xbf16>, vector<128x4xbf16>, vector<8x4xf32> -> vector<8x4xf32>
    %c0_12 = arith.constant 0 : index
    %c0_13 = arith.constant 0 : index
    %20 = vector.load %arg6[%c0_12, %c0_13] : memref<1x4xf32, #tpu.memory_space<vmem>>, vector<1x4xf32>
    %21 = vector.broadcast %20 : vector<1x4xf32> to vector<8x4xf32>
    %22 = arith.addf %19, %21 : vector<8x4xf32>
    %c0_14 = arith.constant 0 : index
    %c0_15 = arith.constant 0 : index
    %23 = vector.load %arg7[%c0_14, %c0_15] : memref<8x4xf32, #tpu.memory_space<vmem>>, vector<8x4xf32>
    tpu.vector_store %arg7[%c0_14, %c0_15], %22 {strides = array<i32>} : memref<8x4xf32, #tpu.memory_space<vmem>>, vector<8x4xf32>,
    return
  }
  func.func @transform_0(%arg0: i32) -> (i32, i32) {
    %c0_i32 = arith.constant 0 : i32
    %c0_i32_0 = arith.constant 0 : i32
    %c0_i32_1 = arith.constant 0 : i32
    return %c0_i32, %c0_i32_0 : i32, i32
  }
  func.func @transform_1(%arg0: i32) -> (i32, i32) {
    %c0_i32 = arith.constant 0 : i32
    %c0_i32_0 = arith.constant 0 : i32
    return %arg0, %c0_i32 : i32, i32
  }
  func.func @transform_2(%arg0: i32) -> (i32, i32) {
    %c0_i32 = arith.constant 0 : i32
    %c0_i32_0 = arith.constant 0 : i32
    %c0_i32_1 = arith.constant 0 : i32
    return %c0_i32, %c0_i32_0 : i32, i32
  }
  func.func @transform_3(%arg0: i32) -> (i32, i32) {
    %c0_i32 = arith.constant 0 : i32
    %c0_i32_0 = arith.constant 0 : i32
    %c0_i32_1 = arith.constant 0 : i32
    return %c0_i32, %c0_i32_0 : i32, i32
  }
  func.func @transform_4(%arg0: i32) -> (i32, i32) {
    %c0_i32 = arith.constant 0 : i32
    %c0_i32_0 = arith.constant 0 : i32
    %c0_i32_1 = arith.constant 0 : i32
    return %c0_i32, %c0_i32_0 : i32, i32
  }
  func.func @transform_5(%arg0: i32) -> (i32, i32) {
    %c0_i32 = arith.constant 0 : i32
    %c0_i32_0 = arith.constant 0 : i32
    %c0_i32_1 = arith.constant 0 : i32
    return %c0_i32, %c0_i32_0 : i32, i32
  }
  func.func @transform_6(%arg0: i32) -> (i32, i32) {
    %c0_i32 = arith.constant 0 : i32
    %c0_i32_0 = arith.constant 0 : i32
    return %arg0, %c0_i32 : i32, i32
  }
}

</mosaic_0001>

<llo_original>
// kernel: tpu_custom_call.1
$region0: #{tpu_custom_call.1}
  #allocation0 [shape = 'u32[]', space=smem, size = 0x4, offset = 0x4, fixed_abs, tag = 'smem constant byte address 0x4 - core index']
  #allocation1 [shape = 'u32[144,128]{1,0:T(1,128)}', space=vmem, size = 0x12000, scoped, tag = 'internal scratch']
  #allocation2 [shape = 'f32[1,1]{1,0:T(1,128)S(6)}', space=smem, size = 0x200, scoped, tag = 'scoped memory for tpu_custom_call.1']
  %s0 = inlined_call_operand.<no memory space> [shape: f32[1,1], index: 0, kind: input, shape index: {}]
  %s1 = inlined_call_operand.vmem [shape: f32[8,32], index: 1, kind: input, shape index: {}]
  %s2 = inlined_call_operand.vmem [shape: f32[32,128], index: 2, kind: input, shape index: {}]
  %s3 = inlined_call_operand.vmem [shape: f32[1,128], index: 3, kind: input, shape index: {}]
  %s4 = inlined_call_operand.vmem [shape: bf16[128,4], index: 4, kind: input, shape index: {}]
  %s5 = inlined_call_operand.vmem [shape: f32[1,4], index: 5, kind: input, shape index: {}]
  %s6 = inlined_call_operand.vmem [shape: f32[8,4], index: 6, kind: output, shape index: {}]
  %s7 = sld [smem:[#allocation0]]
  $region34: #{tpu_custom_call.1} parent=0
    _
  %s9 = ssub.s32 1, %s7
  %s10 = scalar_select 0, %s9, %s7
  %11 = sst [smem:[#allocation2]] %s0
  // Predicated region
  $region2: #{tpu_custom_call.1} parent=0 // pred_check
    _
  $region3: #{tpu_custom_call.1} parent=0 // pred_check_branch
    %13 = sbr.rel (0) target = $region5
  $region4: #{tpu_custom_call.1} parent=0 // pred_region
    _
  $region5: #{tpu_custom_call.1} parent=0 // pred_fallthru
    _
  // Predicated region
  $region6: #{tpu_custom_call.1} parent=0 // pred_check
    _
  $region7: #{tpu_custom_call.1} parent=0 // pred_check_branch
    %15 = sbr.rel (0) target = $region9
  $region8: #{tpu_custom_call.1} parent=0 // pred_region
    _
  $region9: #{tpu_custom_call.1} parent=0 // pred_fallthru
    _
  // Predicated region
  $region10: #{tpu_custom_call.1} parent=0 // pred_check
    _
  $region11: #{tpu_custom_call.1} parent=0 // pred_check_branch
    %17 = sbr.rel (0) target = $region13
  $region12: #{tpu_custom_call.1} parent=0 // pred_region
    _
  $region13: #{tpu_custom_call.1} parent=0 // pred_fallthru
    _
  // Predicated region
  $region14: #{tpu_custom_call.1} parent=0 // pred_check
    _
  $region15: #{tpu_custom_call.1} parent=0 // pred_check_branch
    %19 = sbr.rel (0) target = $region17
  $region16: #{tpu_custom_call.1} parent=0 // pred_region
    _
  $region17: #{tpu_custom_call.1} parent=0 // pred_fallthru
    _
  // Predicated region
  $region18: #{tpu_custom_call.1} parent=0 // pred_check
    _
  $region19: #{tpu_custom_call.1} parent=0 // pred_check_branch
    %21 = sbr.rel (0) target = $region21
  $region20: #{tpu_custom_call.1} parent=0 // pred_region
    _
  $region21: #{tpu_custom_call.1} parent=0 // pred_fallthru
    _
  // Predicated region
  $region22: #{tpu_custom_call.1} parent=0 // pred_check
    _
  $region23: #{tpu_custom_call.1} parent=0 // pred_check_branch
    %23 = sbr.rel (0) target = $region25
  $region24: #{tpu_custom_call.1} parent=0 // pred_region
    _
  $region25: #{tpu_custom_call.1} parent=0 // pred_fallthru
    _
  %v25 = vld [vmem:[%s1] sm:$0xff]
  %s26 = sld [smem:[#allocation2]]
  %v27 = vld [vmem:[%s2] sm:$0xff]
  %v28 = vld [vmem:[%s2 + $0x8] sm:$0xff]
  %v29 = vld [vmem:[%s2 + $0x10] sm:$0xff]
  %v30 = vld [vmem:[%s2 + $0x18] sm:$0xff]
  %v31 = vmul.f32 %v25, %v25
  %vm32 = vcmask 261120
  %v33 = vsel %vm32, %v31, 0.0
  %34 = vadd.xlane.f32.xlu0 %v33
  %v35 = vpop.xlane.xlu0 %34
  %v36 = vstv %s26
  %v37 = vmul.f32 %v36, %v35
  %v39 = vsel %vm32, %v25, 0
  %41 = vmatprep.subr.mxu0 0.0
  %42 = vmatpush1.msra.mxu0 0.0
  %43 = vmatprep.subr.mxu0 0.0
  %44 = vmatpush1.msra.mxu0 0.0
  %45 = vmatprep.subr.mxu0 0.0
  %46 = vmatpush1.msra.mxu0 0.0
  %47 = vmatprep.subr.mxu0 0.0
  %48 = vmatpush1.msra.mxu0 0.0
  %49 = vmatprep.subr.mxu0 0.0
  %50 = vmatpush1.msra.mxu0 0.0
  %51 = vmatprep.subr.mxu0 0.0
  %52 = vmatpush1.msra.mxu0 0.0
  %53 = vmatprep.subr.mxu0 0.0
  %54 = vmatpush1.msra.mxu0 0.0
  %55 = vmatprep.subr.mxu0 0.0
  %56 = vmatpush1.msra.mxu0 0.0
  %57 = vmatprep.subr.mxu0 0.0
  %58 = vmatpush1.msra.mxu0 0.0
  %59 = vmatprep.subr.mxu0 0.0
  %60 = vmatpush1.msra.mxu0 0.0
  %61 = vmatprep.subr.mxu0 0.0
  %62 = vmatpush1.msra.mxu0 0.0
  %63 = vmatprep.subr.mxu0 0.0
  %64 = vmatpush1.msra.mxu0 0.0
  %65 = vmatprep.subr.mxu0 0.0
  %66 = vmatpush1.msra.mxu0 %v30
  %67 = vmatprep.subr.mxu0 0.0
  %68 = vmatpush1.msra.mxu0 %v29
  %69 = vmatprep.subr.mxu0 0.0
  %70 = vmatpush1.msra.mxu0 %v28
  %71 = vmatprep.subr.mxu0 0.0
  %72 = vmatpush1.msra.mxu0 %v27
  %73 = vmatprep.subr.mxu0 0.0
  %74 = vmatpush2.msra.mxu0 0.0
  %75 = vmatprep.subr.mxu0 0.0
  %76 = vmatpush2.msra.mxu0 0.0
  %77 = vmatprep.subr.mxu0 0.0
  %78 = vmatpush2.msra.mxu0 0.0
  %79 = vmatprep.subr.mxu0 0.0
  %80 = vmatpush2.msra.mxu0 0.0
  %81 = vmatprep.subr.mxu0 0.0
  %82 = vmatpush2.msra.mxu0 0.0
  %83 = vmatprep.subr.mxu0 0.0
  %84 = vmatpush2.msra.mxu0 0.0
  %85 = vmatprep.subr.mxu0 0.0
  %86 = vmatpush2.msra.mxu0 0.0
  %87 = vmatprep.subr.mxu0 0.0
  %88 = vmatpush2.msra.mxu0 0.0
  %89 = vmatprep.subr.mxu0 0.0
  %90 = vmatpush2.msra.mxu0 0.0
  %91 = vmatprep.subr.mxu0 0.0
  %92 = vmatpush2.msra.mxu0 0.0
  %93 = vmatprep.subr.mxu0 0.0
  %94 = vmatpush2.msra.mxu0 0.0
  %95 = vmatprep.subr.mxu0 0.0
  %96 = vmatpush2.msra.mxu0 0.0
  %97 = vmatprep.subr.mxu0 0.0
  %98 = vmatpush2.msra.mxu0 0.0
  %99 = vmatprep.subr.mxu0 0.0
  %100 = vmatpush2.msra.mxu0 0.0
  %101 = vmatprep.subr.mxu0 0.0
  %102 = vmatpush2.msra.mxu0 0.0
  %103 = vmatprep.subr.mxu0 0.0
  %104 = vmatpush2.msra.mxu0 0.0
  %105 = vmatprep.mubr.f32.mxu0 0.0
  %106 = vmatmul.mubr.f32.gmra.mxu0 %v39
  %v107 = vpop.f32.mrf.mxu0
  %v108 = vadd.f32 %v37, %v107
  %v109 = vpop.f32.mrf.mxu0
  %110 = vdwg.mxu0
  %v111 = vld [vmem:[%s3] sm:$0x1]
  %v113 = vlaneseq
  %v114 = vshrl.u32 %v113, 7
  %v115 = vsub.s32 0, %v114
  %v116 = vrot.slane %v111, %v115
  %v118 = vadd.f32 %v108, %v116
  %v119 = vmin.f32 %v118, 0.0
  %v120 = vmul.f32 %v119, 1.442695
  %v121 = vpow.pop %v120
  %v122 = vpack.c.bf16 %v121, %v121
  %v123 = vld [vmem:[%s4] sm:$0xf]
  %v124 = vld [vmem:[%s4 + $0x4] sm:$0xf]
  %v125 = vld [vmem:[%s4 + $0x8] sm:$0xf]
  %v126 = vld [vmem:[%s4 + $0xc] sm:$0xf]
  %v127 = vld [vmem:[%s4 + $0x10] sm:$0xf]
  %v128 = vld [vmem:[%s4 + $0x14] sm:$0xf]
  %v129 = vld [vmem:[%s4 + $0x18] sm:$0xf]
  %v130 = vld [vmem:[%s4 + $0x1c] sm:$0xf]
  %v131 = vld [vmem:[%s4 + $0x20] sm:$0xf]
  %v132 = vld [vmem:[%s4 + $0x24] sm:$0xf]
  %v133 = vld [vmem:[%s4 + $0x28] sm:$0xf]
  %v134 = vld [vmem:[%s4 + $0x2c] sm:$0xf]
  %v135 = vld [vmem:[%s4 + $0x30] sm:$0xf]
  %v136 = vld [vmem:[%s4 + $0x34] sm:$0xf]
  %v137 = vld [vmem:[%s4 + $0x38] sm:$0xf]
  %v138 = vld [vmem:[%s4 + $0x3c] sm:$0xf]
  %v139 = vld [vmem:[%s5] sm:$0x1]
  %v141 = vlaneseq
  %v142 = vshrl.u32 %v141, 7
  %v143 = vsub.s32 0, %v142
  %v144 = vrot.slane %v139, %v143
  %v162 = vunpack.c.l.b16 %v123
  %v163 = vunpack.c.l.b16 %v124
  %v164 = vunpack.c.l.b16 %v125
  %v165 = vunpack.c.l.b16 %v126
  %v166 = vunpack.c.l.b16 %v127
  %v167 = vunpack.c.l.b16 %v128
  %v168 = vunpack.c.l.b16 %v129
  %v169 = vunpack.c.l.b16 %v130
  %v170 = vunpack.c.l.b16 %v131
  %v171 = vunpack.c.l.b16 %v132
  %v172 = vunpack.c.l.b16 %v133
  %v173 = vunpack.c.l.b16 %v134
  %v174 = vunpack.c.l.b16 %v135
  %v175 = vunpack.c.l.b16 %v136
  %v176 = vunpack.c.l.b16 %v137
  %v177 = vunpack.c.l.b16 %v138
  %v178 = vpack.c.b16 %v163, %v162
  %v179 = vpack.c.b16 %v165, %v164
  %v180 = vpack.c.b16 %v167, %v166
  %v181 = vpack.c.b16 %v169, %v168
  %v182 = vpack.c.b16 %v171, %v170
  %v183 = vpack.c.b16 %v173, %v172
  %v184 = vpack.c.b16 %v175, %v174
  %v185 = vpack.c.b16 %v177, %v176
  %194 = vmatprep.subr.bf16.mxu0 0
  %195 = vmatpush1.bf16.msra.mxu0 %v185
  %196 = vmatprep.subr.bf16.mxu0 0
  %197 = vmatpush1.bf16.msra.mxu0 %v184
  %198 = vmatprep.subr.bf16.mxu0 0
  %199 = vmatpush1.bf16.msra.mxu0 %v183
  %200 = vmatprep.subr.bf16.mxu0 0
  %201 = vmatpush1.bf16.msra.mxu0 %v182
  %202 = vmatprep.subr.bf16.mxu0 0
  %203 = vmatpush1.bf16.msra.mxu0 %v181
  %204 = vmatprep.subr.bf16.mxu0 0
  %205 = vmatpush1.bf16.msra.mxu0 %v180
  %206 = vmatprep.subr.bf16.mxu0 0
  %207 = vmatpush1.bf16.msra.mxu0 %v179
  %208 = vmatprep.subr.bf16.mxu0 0
  %209 = vmatpush1.bf16.msra.mxu0 %v178
  %210 = vmatprep.subr.bf16.mxu0 0
  %211 = vmatpush2.bf16.msra.mxu0 0
  %212 = vmatprep.subr.bf16.mxu0 0
  %213 = vmatpush2.bf16.msra.mxu0 0
  %214 = vmatprep.subr.bf16.mxu0 0
  %215 = vmatpush2.bf16.msra.mxu0 0
  %216 = vmatprep.subr.bf16.mxu0 0
  %217 = vmatpush2.bf16.msra.mxu0 0
  %218 = vmatprep.subr.bf16.mxu0 0
  %219 = vmatpush2.bf16.msra.mxu0 0
  %220 = vmatprep.subr.bf16.mxu0 0
  %221 = vmatpush2.bf16.msra.mxu0 0
  %222 = vmatprep.subr.bf16.mxu0 0
  %223 = vmatpush2.bf16.msra.mxu0 0
  %224 = vmatprep.subr.bf16.mxu0 0
  %225 = vmatpush2.bf16.msra.mxu0 0
  %226 = vmatprep.mubr.bf16.mxu0 0
  %227 = vmatmul.mubr.bf16.gmra.mxu0 %v122
  %v228 = vpop.f32.mrf.mxu0
  %v229 = vadd.f32 %v144, %v228
  %v230 = vpop.f32.mrf.mxu0
  %v231 = vpop.f32.mrf.mxu0
  %v232 = vpop.f32.mrf.mxu0
  %233 = vdwg.mxu0
  %vm234 = vcmask 31744
  %235 = vst.msk [vmem:[%s6] sm:$0xff] %vm234, %v229
  // Predicated region
  $region26: #{tpu_custom_call.1} parent=0 // pred_check
    _
  $region27: #{tpu_custom_call.1} parent=0 // pred_check_branch
    %237 = sbr.rel (0) target = $region29
  $region28: #{tpu_custom_call.1} parent=0 // pred_region
    _
  $region29: #{tpu_custom_call.1} parent=0 // pred_fallthru
    _
  // Predicated region
  $region30: #{tpu_custom_call.1} parent=0 // pred_check
    _
  $region31: #{tpu_custom_call.1} parent=0 // pred_check_branch
    %239 = sbr.rel (0) target = $region33
  $region32: #{tpu_custom_call.1} parent=0 // pred_region
    _
  $region33: #{tpu_custom_call.1} parent=0 // pred_fallthru
    _

</llo_original>
